<compile_context>
chip_gen: v5e
topology: v5e:2x2
jax: 0.10.0
libtpu: 0.0.40
codegen_flags: <defaults>
</compile_context>

<pallas_src>
import jax
import jax.numpy as jnp
from jax.experimental import pallas as pl
from jax.experimental.pallas import tpu as pltpu


def attention_kernel(inputs_ref, eo_ref, wpk_ref, out_ref):
    inputs = inputs_ref[...]          # (B, 2)
    eo = eo_ref[...]                  # (B, E, C)
    wpk = wpk_ref[...]                # (C+3, E): [We^T (C,E); Wx^T (2,E); w (1,E)]

    B, E, C = eo.shape

    # Static slices of the packed weight slab (trace-time views, tiny).
    we_t = wpk[0:C, :]                # (C, E)  == We.weight.T
    wx_t = wpk[C:C + 2, :]            # (2, E)  == Wx.weight.T
    w = wpk[C + 2:C + 3, :]           # (1, E)  == attention weight

    # ---- score path --------------------------------------------------------
    # Mathematically dead for the output value (softmax over a size-1 axis is
    # identically 1.0); kept only so NaN/Inf in inputs/weights propagate
    # exactly as in PyTorch.  Everything below stays on the VPU / EUP.

    # Wx(inputs): (B, E) via two broadcast FMAs (K=2 is far too small for MXU).
    xw = inputs[:, 0:1] * wx_t[0:1, :] + inputs[:, 1:2] * wx_t[1:2, :]

    # We(expert_outputs): (B, E, E) as an unrolled broadcast-FMA over C (C=8
    # static terms), keeping the (B, E, C) layout -- no reshape, no MXU.
    ew = eo[:, :, 0:1] * we_t[None, 0:1, :]
    for c in range(1, C):
        ew = ew + eo[:, :, c:c + 1] * we_t[None, c:c + 1, :]

    # x = tanh(Wx(inputs) broadcast over the expert axis + We(expert_outputs))
    x = jnp.tanh(xw[:, None, :] + ew)                     # (B, E, E), tanh -> EUP

    # alignment_scores[b, j] = sum_k w[0, k] * x[b, k, j]
    scores = jnp.sum(w[:, :, None] * x, axis=1)           # (B, E)

    # softmax over the size-1 query axis (PyTorch dim=1):
    #   finite score -> exactly 1.0 ; NaN or +-Inf score -> NaN
    # `(s - s) + 1.0` reproduces that with two VPU ops (no EUP exp needed).
    attn = (scores - scores) + 1.0                        # (B, E)

    # ---- context ------------------------------------------------------------
    # context[b, c] = sum_e attn[b, e] * eo[b, e, c]   (E=4: plain VPU reduce)
    ctx = jnp.sum(attn[:, :, None] * eo, axis=1)          # (B, C)

    out_ref[...] = ctx.astype(out_ref.dtype)


def attention_forward(inputs, expert_outputs, wx_w, we_w, attn_w):
    B = inputs.shape[0]
    _, E, C = expert_outputs.shape

    # Pack the three tiny weight operands into a single slab at trace time
    # (free in XLA): one padded HBM->VMEM DMA instead of three.
    wpack = jnp.concatenate([we_w.T, wx_w.T, attn_w], axis=0)   # (C+3, E)

    vmem = lambda: pl.BlockSpec(memory_space=pltpu.MemorySpace.VMEM)

    out2d = pl.pallas_call(
        attention_kernel,
        out_shape=jax.ShapeDtypeStruct((B, C), jnp.float32),
        in_specs=[vmem(), vmem(), vmem()],
        out_specs=vmem(),
    )(inputs, expert_outputs, wpack)

    # Restore the (B, 1, C) PyTorch output shape at trace time (free).
    return out2d.reshape(B, 1, C)


def attention_reference(inputs, expert_outputs, wx_w, we_w, attn_w):
    # Pure-JAX transcription of the PyTorch forward.
    xw = inputs @ wx_w.T                                        # (B, E)
    ew = jnp.einsum("bkc,ec->bke", expert_outputs, we_w)        # (B, E, E)
    x = jnp.tanh(xw[:, None, :] + ew)
    scores = jnp.einsum("oe,bej->boj", attn_w, x)               # (B, 1, E)
    attn = jax.nn.softmax(scores, axis=1)                       # softmax over size-1 axis
    return jnp.einsum("bke,bec->bkc", attn, expert_outputs)     # (B, 1, C)


if __name__ == "__main__":
    batch = 2
    num_experts = 4
    num_classes = 8

    key = jax.random.PRNGKey(0)
    k1, k2, k3, k4, k5 = jax.random.split(key, 5)

    inputs = jax.random.normal(k1, (batch, 2), dtype=jnp.float32)
    expert_outputs = jax.random.normal(
        k2, (batch, num_experts, num_classes), dtype=jnp.float32
    )

    # Deterministic parameter init (shapes from the PyTorch __init__).
    wx_w = jax.random.normal(k3, (num_experts, 2), dtype=jnp.float32) * 0.5
    we_w = jax.random.normal(k4, (num_experts, num_classes), dtype=jnp.float32) * 0.5
    attn_w = jax.random.normal(k5, (1, num_experts), dtype=jnp.float32) * 0.5

    out = attention_forward(inputs, expert_outputs, wx_w, we_w, attn_w)
    out = jax.block_until_ready(out)

    ref = attention_reference(inputs, expert_outputs, wx_w, we_w, attn_w)
    assert out.shape == (batch, 1, num_classes)
    assert jnp.allclose(out, ref, atol=1e-5, rtol=1e-5)

    print("KERNEL_OK")
</pallas_src>

<mosaic_0001>
module attributes {stable_mosaic.version = 11 : i64} {
  func.func @attention_kernel(%arg0: memref<2x2xf32, #tpu.memory_space<vmem>>, %arg1: memref<2x4x8xf32, #tpu.memory_space<vmem>>, %arg2: memref<11x4xf32, #tpu.memory_space<vmem>>, %arg3: memref<2x8xf32, #tpu.memory_space<vmem>>) attributes {dimension_semantics = [], scalar_prefetch = 0 : i64, scratch_operands = 0 : i64, tpu.core_type = #tpu.core_type<tc>} {
    %c0 = arith.constant 0 : index
    %c0_0 = arith.constant 0 : index
    %0 = vector.load %arg0[%c0, %c0_0] : memref<2x2xf32, #tpu.memory_space<vmem>>, vector<2x2xf32>
    %c0_1 = arith.constant 0 : index
    %c0_2 = arith.constant 0 : index
    %c0_3 = arith.constant 0 : index
    %1 = vector.load %arg1[%c0_1, %c0_2, %c0_3] : memref<2x4x8xf32, #tpu.memory_space<vmem>>, vector<2x4x8xf32>
    %c0_4 = arith.constant 0 : index
    %c0_5 = arith.constant 0 : index
    %2 = vector.load %arg2[%c0_4, %c0_5] : memref<11x4xf32, #tpu.memory_space<vmem>>, vector<11x4xf32>
    %3 = vector.extract_strided_slice %2 {offsets = [0, 0], sizes = [8, 4], strides = [1, 1]} : vector<11x4xf32> to vector<8x4xf32>
    %4 = vector.extract_strided_slice %2 {offsets = [8, 0], sizes = [2, 4], strides = [1, 1]} : vector<11x4xf32> to vector<2x4xf32>
    %5 = vector.extract_strided_slice %2 {offsets = [10, 0], sizes = [1, 4], strides = [1, 1]} : vector<11x4xf32> to vector<1x4xf32>
    %6 = vector.extract_strided_slice %0 {offsets = [0, 0], sizes = [2, 1], strides = [1, 1]} : vector<2x2xf32> to vector<2x1xf32>
    %7 = vector.extract_strided_slice %4 {offsets = [0, 0], sizes = [1, 4], strides = [1, 1]} : vector<2x4xf32> to vector<1x4xf32>
    %8 = vector.broadcast %6 : vector<2x1xf32> to vector<2x4xf32>
    %9 = vector.broadcast %7 : vector<1x4xf32> to vector<2x4xf32>
    %10 = arith.mulf %8, %9 : vector<2x4xf32>
    %11 = vector.extract_strided_slice %0 {offsets = [0, 1], sizes = [2, 1], strides = [1, 1]} : vector<2x2xf32> to vector<2x1xf32>
    %12 = vector.extract_strided_slice %4 {offsets = [1, 0], sizes = [1, 4], strides = [1, 1]} : vector<2x4xf32> to vector<1x4xf32>
    %13 = vector.broadcast %11 : vector<2x1xf32> to vector<2x4xf32>
    %14 = vector.broadcast %12 : vector<1x4xf32> to vector<2x4xf32>
    %15 = arith.mulf %13, %14 : vector<2x4xf32>
    %16 = arith.addf %10, %15 : vector<2x4xf32>
    %17 = vector.extract_strided_slice %1 {offsets = [0, 0, 0], sizes = [2, 4, 1], strides = [1, 1, 1]} : vector<2x4x8xf32> to vector<2x4x1xf32>
    %18 = vector.extract_strided_slice %3 {offsets = [0, 0], sizes = [1, 4], strides = [1, 1]} : vector<8x4xf32> to vector<1x4xf32>
    %19 = vector.shape_cast %18 : vector<1x4xf32> to vector<1x1x4xf32>
    %20 = vector.broadcast %17 : vector<2x4x1xf32> to vector<2x4x4xf32>
    %21 = vector.broadcast %19 : vector<1x1x4xf32> to vector<2x4x4xf32>
    %22 = arith.mulf %20, %21 : vector<2x4x4xf32>
    %23 = vector.extract_strided_slice %1 {offsets = [0, 0, 1], sizes = [2, 4, 1], strides = [1, 1, 1]} : vector<2x4x8xf32> to vector<2x4x1xf32>
    %24 = vector.extract_strided_slice %3 {offsets = [1, 0], sizes = [1, 4], strides = [1, 1]} : vector<8x4xf32> to vector<1x4xf32>
    %25 = vector.shape_cast %24 : vector<1x4xf32> to vector<1x1x4xf32>
    %26 = vector.broadcast %23 : vector<2x4x1xf32> to vector<2x4x4xf32>
    %27 = vector.broadcast %25 : vector<1x1x4xf32> to vector<2x4x4xf32>
    %28 = arith.mulf %26, %27 : vector<2x4x4xf32>
    %29 = arith.addf %22, %28 : vector<2x4x4xf32>
    %30 = vector.extract_strided_slice %1 {offsets = [0, 0, 2], sizes = [2, 4, 1], strides = [1, 1, 1]} : vector<2x4x8xf32> to vector<2x4x1xf32>
    %31 = vector.extract_strided_slice %3 {offsets = [2, 0], sizes = [1, 4], strides = [1, 1]} : vector<8x4xf32> to vector<1x4xf32>
    %32 = vector.shape_cast %31 : vector<1x4xf32> to vector<1x1x4xf32>
    %33 = vector.broadcast %30 : vector<2x4x1xf32> to vector<2x4x4xf32>
    %34 = vector.broadcast %32 : vector<1x1x4xf32> to vector<2x4x4xf32>
    %35 = arith.mulf %33, %34 : vector<2x4x4xf32>
    %36 = arith.addf %29, %35 : vector<2x4x4xf32>
    %37 = vector.extract_strided_slice %1 {offsets = [0, 0, 3], sizes = [2, 4, 1], strides = [1, 1, 1]} : vector<2x4x8xf32> to vector<2x4x1xf32>
    %38 = vector.extract_strided_slice %3 {offsets = [3, 0], sizes = [1, 4], strides = [1, 1]} : vector<8x4xf32> to vector<1x4xf32>
    %39 = vector.shape_cast %38 : vector<1x4xf32> to vector<1x1x4xf32>
    %40 = vector.broadcast %37 : vector<2x4x1xf32> to vector<2x4x4xf32>
    %41 = vector.broadcast %39 : vector<1x1x4xf32> to vector<2x4x4xf32>
    %42 = arith.mulf %40, %41 : vector<2x4x4xf32>
    %43 = arith.addf %36, %42 : vector<2x4x4xf32>
    %44 = vector.extract_strided_slice %1 {offsets = [0, 0, 4], sizes = [2, 4, 1], strides = [1, 1, 1]} : vector<2x4x8xf32> to vector<2x4x1xf32>
    %45 = vector.extract_strided_slice %3 {offsets = [4, 0], sizes = [1, 4], strides = [1, 1]} : vector<8x4xf32> to vector<1x4xf32>
    %46 = vector.shape_cast %45 : vector<1x4xf32> to vector<1x1x4xf32>
    %47 = vector.broadcast %44 : vector<2x4x1xf32> to vector<2x4x4xf32>
    %48 = vector.broadcast %46 : vector<1x1x4xf32> to vector<2x4x4xf32>
    %49 = arith.mulf %47, %48 : vector<2x4x4xf32>
    %50 = arith.addf %43, %49 : vector<2x4x4xf32>
    %51 = vector.extract_strided_slice %1 {offsets = [0, 0, 5], sizes = [2, 4, 1], strides = [1, 1, 1]} : vector<2x4x8xf32> to vector<2x4x1xf32>
    %52 = vector.extract_strided_slice %3 {offsets = [5, 0], sizes = [1, 4], strides = [1, 1]} : vector<8x4xf32> to vector<1x4xf32>
    %53 = vector.shape_cast %52 : vector<1x4xf32> to vector<1x1x4xf32>
    %54 = vector.broadcast %51 : vector<2x4x1xf32> to vector<2x4x4xf32>
    %55 = vector.broadcast %53 : vector<1x1x4xf32> to vector<2x4x4xf32>
    %56 = arith.mulf %54, %55 : vector<2x4x4xf32>
    %57 = arith.addf %50, %56 : vector<2x4x4xf32>
    %58 = vector.extract_strided_slice %1 {offsets = [0, 0, 6], sizes = [2, 4, 1], strides = [1, 1, 1]} : vector<2x4x8xf32> to vector<2x4x1xf32>
    %59 = vector.extract_strided_slice %3 {offsets = [6, 0], sizes = [1, 4], strides = [1, 1]} : vector<8x4xf32> to vector<1x4xf32>
    %60 = vector.shape_cast %59 : vector<1x4xf32> to vector<1x1x4xf32>
    %61 = vector.broadcast %58 : vector<2x4x1xf32> to vector<2x4x4xf32>
    %62 = vector.broadcast %60 : vector<1x1x4xf32> to vector<2x4x4xf32>
    %63 = arith.mulf %61, %62 : vector<2x4x4xf32>
    %64 = arith.addf %57, %63 : vector<2x4x4xf32>
    %65 = vector.extract_strided_slice %1 {offsets = [0, 0, 7], sizes = [2, 4, 1], strides = [1, 1, 1]} : vector<2x4x8xf32> to vector<2x4x1xf32>
    %66 = vector.extract_strided_slice %3 {offsets = [7, 0], sizes = [1, 4], strides = [1, 1]} : vector<8x4xf32> to vector<1x4xf32>
    %67 = vector.shape_cast %66 : vector<1x4xf32> to vector<1x1x4xf32>
    %68 = vector.broadcast %65 : vector<2x4x1xf32> to vector<2x4x4xf32>
    %69 = vector.broadcast %67 : vector<1x1x4xf32> to vector<2x4x4xf32>
    %70 = arith.mulf %68, %69 : vector<2x4x4xf32>
    %71 = arith.addf %64, %70 : vector<2x4x4xf32>
    %72 = vector.shape_cast %16 : vector<2x4xf32> to vector<2x1x4xf32>
    %73 = vector.broadcast %72 : vector<2x1x4xf32> to vector<2x4x4xf32>
    %74 = arith.addf %73, %71 : vector<2x4x4xf32>
    %75 = math.tanh %74 : vector<2x4x4xf32>
    %76 = vector.shape_cast %5 : vector<1x4xf32> to vector<1x4x1xf32>
    %77 = vector.broadcast %76 : vector<1x4x1xf32> to vector<2x4x4xf32>
    %78 = arith.mulf %77, %75 : vector<2x4x4xf32>
    %cst = arith.constant dense<0.000000e+00> : vector<2x4xf32>
    %79 = vector.multi_reduction <add>, %78, %cst [1] : vector<2x4x4xf32> to vector<2x4xf32>
    %80 = arith.subf %79, %79 : vector<2x4xf32>
    %cst_6 = arith.constant 1.000000e+00 : f32
    %81 = vector.broadcast %cst_6 : f32 to vector<2x4xf32>
    %82 = arith.addf %80, %81 : vector<2x4xf32>
    %83 = vector.shape_cast %82 : vector<2x4xf32> to vector<2x4x1xf32>
    %84 = vector.broadcast %83 : vector<2x4x1xf32> to vector<2x4x8xf32>
    %85 = arith.mulf %84, %1 : vector<2x4x8xf32>
    %cst_7 = arith.constant dense<0.000000e+00> : vector<2x8xf32>
    %86 = vector.multi_reduction <add>, %85, %cst_7 [1] : vector<2x4x8xf32> to vector<2x8xf32>
    %c0_8 = arith.constant 0 : index
    %c0_9 = arith.constant 0 : index
    %87 = vector.load %arg3[%c0_8, %c0_9] : memref<2x8xf32, #tpu.memory_space<vmem>>, vector<2x8xf32>
    tpu.vector_store %arg3[%c0_8, %c0_9], %86 {strides = array<i32>} : memref<2x8xf32, #tpu.memory_space<vmem>>, vector<2x8xf32>,
    return
  }
}

</mosaic_0001>

<llo_original>
// kernel: tpu_custom_call.1
$region0: #{tpu_custom_call.1}
  #allocation0 [shape = 'u32[]', space=smem, size = 0x4, offset = 0x4, fixed_abs, tag = 'smem constant byte address 0x4 - core index']
  #allocation1 [shape = 'u32[72,128]{1,0:T(1,128)}', space=vmem, size = 0x9000, scoped, tag = 'internal scratch']
  %s0 = inlined_call_operand.vmem [shape: f32[2,2], index: 0, kind: input, shape index: {}]
  %s1 = inlined_call_operand.vmem [shape: f32[2,4,8], index: 1, kind: input, shape index: {}]
  %s2 = inlined_call_operand.vmem [shape: f32[11,4], index: 2, kind: input, shape index: {}]
  %s3 = inlined_call_operand.hbm [shape: f32[2,8], index: 3, kind: output, shape index: {}]
  %s4 = sld [smem:[#allocation0]]
  $region22: #{tpu_custom_call.1} parent=0
    _
  %s6 = ssub.s32 1, %s4
  %s7 = scalar_select 0, %s6, %s4
  $region1: #{tpu_custom_call.1} parent=0
    #allocation2 [shape = 'u8[1024]{0}', space=vmem, size = 0x400, scoped, tag = 'output window, operand 0, single buffered']
    #allocation3 [shape = 's32[1]{0}', space=sflag, size = 0x4, scoped, tag = 'scoped memory for tpu_custom_call.1']
    %8 = vsyncpa [#allocation3], 0
    // Predicated region
    $region2: #{tpu_custom_call.1} parent=1 // pred_check
      _
    $region3: #{tpu_custom_call.1} parent=1 // pred_check_branch
      %10 = sbr.rel (0) target = $region5
    $region4: #{tpu_custom_call.1} parent=1 // pred_region
      _
    $region5: #{tpu_custom_call.1} parent=1 // pred_fallthru
      _
    // Predicated region
    $region6: #{tpu_custom_call.1} parent=1 // pred_check
      _
    $region7: #{tpu_custom_call.1} parent=1 // pred_check_branch
      %12 = sbr.rel (0) target = $region9
    $region8: #{tpu_custom_call.1} parent=1 // pred_region
      _
    $region9: #{tpu_custom_call.1} parent=1 // pred_fallthru
      _
    // Predicated region
    $region10: #{tpu_custom_call.1} parent=1 // pred_check
      _
    $region11: #{tpu_custom_call.1} parent=1 // pred_check_branch
      %14 = sbr.rel (0) target = $region13
    $region12: #{tpu_custom_call.1} parent=1 // pred_region
      _
    $region13: #{tpu_custom_call.1} parent=1 // pred_fallthru
      _
    %v15 = vld [vmem:[%s0] sm:$0x3]
    %v16 = vld [vmem:[%s1] sm:$0xf]
    %v17 = vld [vmem:[%s1 + $0x4] sm:$0xf]
    %v18 = vld [vmem:[%s2] sm:$0xff]
    %v19 = vld [vmem:[%s2 + $0x8] sm:$0x7]
    %21 = vset.pattern.permute.xlu0 0
    %22 = vperm.xlu0 %21, %v15
    %v23 = vpop.permute.xlu0 %22
    %v25 = vperm.slane %v19, 0
    %v26 = vmul.f32 %v23, %v25
    %27 = vset.pattern.permute.xlu0 1
    %28 = vperm.xlu0 %27, %v15
    %v29 = vpop.permute.xlu0 %28
    %v31 = vperm.slane %v19, 1
    %v32 = vmul.f32 %v29, %v31
    %v33 = vadd.f32 %v26, %v32
    %35 = vset.pattern.permute.xlu0 0
    %36 = vperm.xlu0 %35, %v16
    %v37 = vpop.permute.xlu0 %36
    %40 = vset.pattern.permute.xlu0 0
    %41 = vperm.xlu0 %40, %v17
    %v42 = vpop.permute.xlu0 %41
    %v44 = vperm.slane %v18, 0
    %v45 = vmul.f32 %v37, %v44
    %v46 = vmul.f32 %v42, %v44
    %47 = vset.pattern.permute.xlu0 1
    %48 = vperm.xlu0 %47, %v16
    %v49 = vpop.permute.xlu0 %48
    %51 = vset.pattern.permute.xlu0 1
    %52 = vperm.xlu0 %51, %v17
    %v53 = vpop.permute.xlu0 %52
    %v55 = vperm.slane %v18, 1
    %v56 = vmul.f32 %v49, %v55
    %v57 = vmul.f32 %v53, %v55
    %v58 = vadd.f32 %v45, %v56
    %v59 = vadd.f32 %v46, %v57
    %60 = vset.pattern.permute.xlu0 2
    %61 = vperm.xlu0 %60, %v16
    %v62 = vpop.permute.xlu0 %61
    %64 = vset.pattern.permute.xlu0 2
    %65 = vperm.xlu0 %64, %v17
    %v66 = vpop.permute.xlu0 %65
    %v68 = vperm.slane %v18, 2
    %v69 = vmul.f32 %v62, %v68
    %v70 = vmul.f32 %v66, %v68
    %v71 = vadd.f32 %v58, %v69
    %v72 = vadd.f32 %v59, %v70
    %73 = vset.pattern.permute.xlu0 3
    %74 = vperm.xlu0 %73, %v16
    %v75 = vpop.permute.xlu0 %74
    %77 = vset.pattern.permute.xlu0 3
    %78 = vperm.xlu0 %77, %v17
    %v79 = vpop.permute.xlu0 %78
    %v81 = vperm.slane %v18, 3
    %v82 = vmul.f32 %v75, %v81
    %v83 = vmul.f32 %v79, %v81
    %v84 = vadd.f32 %v71, %v82
    %v85 = vadd.f32 %v72, %v83
    %86 = vset.pattern.permute.xlu0 4
    %87 = vperm.xlu0 %86, %v16
    %v88 = vpop.permute.xlu0 %87
    %90 = vset.pattern.permute.xlu0 4
    %91 = vperm.xlu0 %90, %v17
    %v92 = vpop.permute.xlu0 %91
    %v94 = vperm.slane %v18, 4
    %v95 = vmul.f32 %v88, %v94
    %v96 = vmul.f32 %v92, %v94
    %v97 = vadd.f32 %v84, %v95
    %v98 = vadd.f32 %v85, %v96
    %99 = vset.pattern.permute.xlu0 5
    %100 = vperm.xlu0 %99, %v16
    %v101 = vpop.permute.xlu0 %100
    %103 = vset.pattern.permute.xlu0 5
    %104 = vperm.xlu0 %103, %v17
    %v105 = vpop.permute.xlu0 %104
    %v107 = vperm.slane %v18, 5
    %v108 = vmul.f32 %v101, %v107
    %v109 = vmul.f32 %v105, %v107
    %v110 = vadd.f32 %v97, %v108
    %v111 = vadd.f32 %v98, %v109
    %112 = vset.pattern.permute.xlu0 6
    %113 = vperm.xlu0 %112, %v16
    %v114 = vpop.permute.xlu0 %113
    %116 = vset.pattern.permute.xlu0 6
    %117 = vperm.xlu0 %116, %v17
    %v118 = vpop.permute.xlu0 %117
    %v120 = vperm.slane %v18, 6
    %v121 = vmul.f32 %v114, %v120
    %v122 = vmul.f32 %v118, %v120
    %v123 = vadd.f32 %v110, %v121
    %v124 = vadd.f32 %v111, %v122
    %125 = vset.pattern.permute.xlu0 7
    %126 = vperm.xlu0 %125, %v16
    %v127 = vpop.permute.xlu0 %126
    %129 = vset.pattern.permute.xlu0 7
    %130 = vperm.xlu0 %129, %v17
    %v131 = vpop.permute.xlu0 %130
    %v133 = vperm.slane %v18, 7
    %v134 = vmul.f32 %v127, %v133
    %v135 = vmul.f32 %v131, %v133
    %v136 = vadd.f32 %v123, %v134
    %v137 = vadd.f32 %v124, %v135
    %v139 = vrot.slane %v33, 1
    %v140 = vperm.slane %v33, 0
    %v141 = vperm.slane %v139, 0
    %v144 = vadd.f32 %v140, %v136
    %v145 = vadd.f32 %v141, %v137
    %v146 = vtanh.pop %v144
    %v147 = vtanh.pop %v145
    %v148 = vperm.slane %v19, 2
    %v149 = vlaneseq
    %v150 = vshrl.u32 %v149, 7
    %152 = vset.pattern.permute.xlu0 %v150
    %153 = vperm.xlu0 %152, %v148
    %v154 = vpop.permute.xlu0 %153
    %v155 = vmul.f32 %v154, %v146
    %v156 = vmul.f32 %v154, %v147
    %vm157 = vcmask 27648
    %v158 = vsel %vm157, %v155, 0.0
    %v159 = vrot.slane %v158, 4
    %v160 = vadd.f32 %v158, %v159
    %v161 = vrot.slane %v160, 2
    %v162 = vadd.f32 %v160, %v161
    %v163 = vrot.slane %v162, 1
    %v164 = vadd.f32 %v162, %v163
    %v165 = vsel %vm157, %v156, 0.0
    %v166 = vrot.slane %v165, 4
    %v167 = vadd.f32 %v165, %v166
    %v168 = vrot.slane %v167, 2
    %v169 = vadd.f32 %v167, %v168
    %v170 = vrot.slane %v169, 1
    %v171 = vadd.f32 %v169, %v170
    %v172 = vsub.f32 %v164, %v164
    %v173 = vsub.f32 %v171, %v171
    %v174 = vadd.f32 %v172, 1.0
    %v175 = vadd.f32 %v173, 1.0
    %v176 = vlaneseq
    %v177 = vshrl.u32 %v176, 7
    %179 = vset.pattern.permute.xlu0 %v177
    %180 = vperm.xlu0 %179, %v174
    %v181 = vpop.permute.xlu0 %180
    %v182 = vlaneseq
    %v183 = vshrl.u32 %v182, 7
    %185 = vset.pattern.permute.xlu0 %v183
    %186 = vperm.xlu0 %185, %v175
    %v187 = vpop.permute.xlu0 %186
    %v188 = vmul.f32 %v181, %v16
    %v189 = vmul.f32 %v187, %v17
    %vm190 = vcmask 60416
    %v191 = vsel %vm190, %v188, 0.0
    %v192 = vrot.slane %v191, 4
    %v193 = vadd.f32 %v191, %v192
    %v194 = vrot.slane %v193, 2
    %v195 = vadd.f32 %v193, %v194
    %v196 = vrot.slane %v195, 1
    %v197 = vadd.f32 %v195, %v196
    %v198 = vsel %vm190, %v189, 0.0
    %v199 = vrot.slane %v198, 4
    %v200 = vadd.f32 %v198, %v199
    %v201 = vrot.slane %v200, 2
    %v202 = vadd.f32 %v200, %v201
    %v203 = vrot.slane %v202, 1
    %v204 = vadd.f32 %v202, %v203
    %vm207 = vcmask 1041409
    %v208 = vsel %vm207, %v204, %v197
    %vm210 = vcmask 58368
    %211 = vst.msk [vmem:[#allocation2] sm:$0x3] %vm210, %v208
    // Predicated region
    $region14: #{tpu_custom_call.1} parent=1 // pred_check
      _
    $region15: #{tpu_custom_call.1} parent=1 // pred_check_branch
      %213 = sbr.rel (0) target = $region17
    $region16: #{tpu_custom_call.1} parent=1 // pred_region
      %215 = vsyncadd [#allocation3], 0
      %s217 = sshll.u32 [#allocation2], 4
      %s218 = int_to_ptr.vmem [resolvable:$true] %s217
      %s219 = sshll.u32 %s3, 4
      %s220 = int_to_ptr.hbm [resolvable:$true] %s219
      %222 = dma.vmem_to_hbm [thread:$0]  %s218, 32, %s220, [#allocation3]
    $region17: #{tpu_custom_call.1} parent=1 // pred_fallthru
      _
    // Predicated region
    $region18: #{tpu_custom_call.1} parent=1 // pred_check
      _
    $region19: #{tpu_custom_call.1} parent=1 // pred_check_branch
      %224 = sbr.rel (0) target = $region21
    $region20: #{tpu_custom_call.1} parent=1 // pred_region
      %226 = dma.done [#allocation3], 32
    $region21: #{tpu_custom_call.1} parent=1 // pred_fallthru
      _
    %227 = vsyncpa [#allocation3], 1

</llo_original>
